<compile_context>
chip_gen: v7x
topology: tpu7x:2x2x1
jax: 0.10.0
libtpu: 0.0.40
codegen_flags: <defaults>
</compile_context>

<pallas_src>
import jax
import jax.numpy as jnp
from jax.experimental import pallas as pl
from jax.experimental.pallas import tpu as pltpu


def _round_up(a, b):
    return ((a + b - 1) // b) * b


def adapter_kernel(x_ref, wd_ref, wu_ref, o_ref):
    # x_ref : (tm, C)   token tile, original activation dtype
    # wd_ref: (C, Dp)   adapter_down weight, pre-transposed + Dp-padded (bf16)
    # wu_ref: (Dp, C)   adapter_up   weight, pre-transposed + Dp-padded (bf16)
    # o_ref : (tm, C)
    x = x_ref[...].astype(wd_ref.dtype)                 # cast in VMEM, not in HBM
    # Down-projection: NN contraction, f32 accumulation on the MXU.
    h = jnp.dot(x, wd_ref[...], preferred_element_type=jnp.float32)   # (tm, Dp)
    h = jnp.maximum(h, 0.0)                             # ReLU (f32)
    # Dropout(p=0.1) is identity in eval mode.
    y = jnp.dot(h.astype(wu_ref.dtype), wu_ref[...],
                preferred_element_type=jnp.float32)     # (tm, C)
    o_ref[...] = y.astype(o_ref.dtype)


def prepare_adapter_weights(w_down, w_up, compute_dtype=jnp.bfloat16):
    """One-time (init-time) weight prep — keep out of the hot path.

    w_down: (dim, C)  PyTorch nn.Linear(C, dim) layout  -> (C, Dp)
    w_up  : (C, dim)  PyTorch nn.Linear(dim, C) layout  -> (Dp, C)
    Bottleneck dim is zero-padded to a multiple of 128 (padding contributes
    exactly 0 through relu + matmul); channel dim C is left untouched.
    """
    dim, C = w_down.shape
    assert w_up.shape == (C, dim)
    Dp = _round_up(dim, 128)
    wd_t = jnp.pad(w_down.T.astype(compute_dtype), ((0, 0), (0, Dp - dim)))
    wu_t = jnp.pad(w_up.T.astype(compute_dtype), ((0, Dp - dim), (0, 0)))
    return wd_t, wu_t


def _vmem_capacity_bytes():
    try:
        return int(pltpu.get_tpu_info().vmem_capacity_bytes)
    except Exception:
        return 64 * 1024 * 1024          # conservative fallback (v7x per-TC)


def adapter_forward(x, wd_t, wu_t, *, tm=1024, out_dtype=None):
    """Fused AdaptFormer adapter forward.

    x          : (B, N, C) activations (any float dtype; cast to bf16 in-kernel)
    wd_t, wu_t : outputs of prepare_adapter_weights (init-time)
    """
    B, N, C = x.shape
    Dp = wd_t.shape[1]
    assert wd_t.shape == (C, Dp) and wu_t.shape == (Dp, C)
    M = B * N
    out_dtype = x.dtype if out_dtype is None else out_dtype

    x_item = jnp.dtype(x.dtype).itemsize
    o_item = jnp.dtype(out_dtype).itemsize
    w_item = jnp.dtype(wd_t.dtype).itemsize
    Cp = _round_up(C, 128)                       # lane-padded VMEM footprint

    w_bytes = 2 * 2 * Cp * Dp * w_item           # 2 weights, 2 buffers each

    def vmem_need(t):                            # honest per-dtype accounting
        return 2 * t * Cp * (x_item + o_item) + w_bytes

    capacity = _vmem_capacity_bytes()
    budget = min(capacity // 3, 40 * 1024 * 1024)

    # Token tile: start big, shrink in 256-row (MXU-width) steps to fit VMEM.
    tm_eff = max(256, _round_up(tm, 256))
    while tm_eff > 256 and vmem_need(tm_eff) > budget:
        tm_eff -= 256
    while tm_eff > 16 and vmem_need(tm_eff) > budget:
        tm_eff -= 16
    # v7x megacore: keep >= 2 grid steps whenever there is enough work.
    if M >= 512:
        tm_eff = min(tm_eff, _round_up(-(-M // 2), 256))
    # Never (much) larger than the token count; keep packing-friendly rounding.
    tm_eff = min(tm_eff, _round_up(M, 16))
    if tm_eff >= 256:
        tm_eff = (tm_eff // 256) * 256
    else:
        tm_eff = _round_up(max(tm_eff, 16), 16)

    grid_m = pl.cdiv(M, tm_eff)
    vmem_limit = int(min(capacity // 2,
                         max(vmem_need(tm_eff) + (4 << 20), 16 << 20)))

    x2 = x.reshape(M, C)                         # contiguous reshape: free

    out = pl.pallas_call(
        adapter_kernel,
        out_shape=jax.ShapeDtypeStruct((M, C), out_dtype),
        grid_spec=pltpu.PrefetchScalarGridSpec(
            num_scalar_prefetch=0,
            grid=(grid_m,),
            in_specs=[
                pl.BlockSpec((tm_eff, C), lambda i: (i, 0)),
                pl.BlockSpec((C, Dp), lambda i: (0, 0)),   # grid-invariant
                pl.BlockSpec((Dp, C), lambda i: (0, 0)),   # grid-invariant
            ],
            out_specs=pl.BlockSpec((tm_eff, C), lambda i: (i, 0)),
        ),
        compiler_params=pltpu.CompilerParams(
            dimension_semantics=("parallel",),
            vmem_limit_bytes=vmem_limit),
    )(x2, wd_t, wu_t)

    return out.reshape(B, N, C)


if __name__ == "__main__":
    # Small shapes consistent with the module forward: x is (B, N, C=in_dim).
    B, N, in_dim, dim = 2, 8, 32, 16

    key = jax.random.PRNGKey(0)
    kx, kd, ku = jax.random.split(key, 3)

    x = jax.random.normal(kx, (B, N, in_dim), dtype=jnp.float32)

    # The reference zero-inits adapter_up (output would be trivially zero);
    # use small random values so the fused compute is actually exercised.
    w_down = jax.random.normal(kd, (dim, in_dim), dtype=jnp.float32) * 0.02
    w_up = jax.random.normal(ku, (in_dim, dim), dtype=jnp.float32) * 0.001

    wd_t, wu_t = prepare_adapter_weights(w_down, w_up)   # init-time weight prep
    y = adapter_forward(x, wd_t, wu_t)
    y = jax.block_until_ready(y)
    assert y.shape == (B, N, in_dim) and y.dtype == x.dtype

    # Reference 1: bf16-rounded inputs, f32 math (matches kernel numerics).
    xb = x.reshape(B * N, in_dim).astype(jnp.bfloat16).astype(jnp.float32)
    wdb = w_down.astype(jnp.bfloat16).astype(jnp.float32)
    wub = w_up.astype(jnp.bfloat16).astype(jnp.float32)
    h_ref = jnp.maximum(xb @ wdb.T, 0.0)
    h_ref = h_ref.astype(jnp.bfloat16).astype(jnp.float32)
    y_ref_bf = (h_ref @ wub.T).reshape(B, N, in_dim).astype(x.dtype)
    assert jnp.allclose(y, y_ref_bf, atol=1e-5, rtol=1e-3), float(
        jnp.max(jnp.abs(y - y_ref_bf)))

    # Reference 2: pure-f32 PyTorch-equivalent math (loose tolerance for bf16).
    y_ref_f32 = (jnp.maximum(x.reshape(B * N, in_dim) @ w_down.T, 0.0)
                 @ w_up.T).reshape(B, N, in_dim)
    assert jnp.allclose(y, y_ref_f32, atol=1e-4, rtol=5e-2), float(
        jnp.max(jnp.abs(y - y_ref_f32)))

    print("KERNEL_OK")
</pallas_src>

<mosaic_0001>
module attributes {stable_mosaic.version = 11 : i64} {
  func.func @adapter_kernel(%arg0: i32, %arg1: memref<16x32xf32, #tpu.memory_space<vmem>>, %arg2: memref<32x128xbf16, #tpu.memory_space<vmem>>, %arg3: memref<128x32xbf16, #tpu.memory_space<vmem>>, %arg4: memref<16x32xf32, #tpu.memory_space<vmem>>) attributes {dimension_semantics = [#tpu.dimension_semantics<parallel>], iteration_bounds = array<i64: 1>, scalar_prefetch = 0 : i64, scratch_operands = 0 : i64, tpu.core_type = #tpu.core_type<tc>, window_params = [{transform_indices = @transform_0, window_bounds = array<i64: 16, 32>}, {pipeline_mode = #tpu.pipeline_mode<synchronous>, transform_indices = @transform_1, window_bounds = array<i64: 32, 128>}, {pipeline_mode = #tpu.pipeline_mode<synchronous>, transform_indices = @transform_2, window_bounds = array<i64: 128, 32>}, {transform_indices = @transform_3, window_bounds = array<i64: 16, 32>}]} {
    %c0 = arith.constant 0 : index
    %c0_0 = arith.constant 0 : index
    %0 = vector.load %arg1[%c0, %c0_0] : memref<16x32xf32, #tpu.memory_space<vmem>>, vector<16x32xf32>
    %1 = arith.truncf %0 : vector<16x32xf32> to vector<16x32xbf16>
    %c0_1 = arith.constant 0 : index
    %c0_2 = arith.constant 0 : index
    %2 = vector.load %arg2[%c0_1, %c0_2] : memref<32x128xbf16, #tpu.memory_space<vmem>>, vector<32x128xbf16>
    %cst = arith.constant dense<0.000000e+00> : vector<16x128xf32>
    %3 = tpu.matmul %1, %2, %cst {dimension_numbers = #tpu.dot_dimension_numbers<[1], [0], [0], [1], [0, 0, 1, 1], [], []>} : vector<16x32xbf16>, vector<32x128xbf16>, vector<16x128xf32> -> vector<16x128xf32>
    %cst_3 = arith.constant 0.000000e+00 : f32
    %4 = vector.broadcast %cst_3 : f32 to vector<16x128xf32>
    %5 = arith.maximumf %3, %4 : vector<16x128xf32>
    %6 = arith.truncf %5 : vector<16x128xf32> to vector<16x128xbf16>
    %c0_4 = arith.constant 0 : index
    %c0_5 = arith.constant 0 : index
    %7 = vector.load %arg3[%c0_4, %c0_5] : memref<128x32xbf16, #tpu.memory_space<vmem>>, vector<128x32xbf16>
    %cst_6 = arith.constant dense<0.000000e+00> : vector<16x32xf32>
    %8 = tpu.matmul %6, %7, %cst_6 {dimension_numbers = #tpu.dot_dimension_numbers<[1], [0], [0], [1], [0, 0, 1, 1], [], []>} : vector<16x128xbf16>, vector<128x32xbf16>, vector<16x32xf32> -> vector<16x32xf32>
    %c0_7 = arith.constant 0 : index
    %c0_8 = arith.constant 0 : index
    %9 = vector.load %arg4[%c0_7, %c0_8] : memref<16x32xf32, #tpu.memory_space<vmem>>, vector<16x32xf32>
    tpu.vector_store %arg4[%c0_7, %c0_8], %8 {strides = array<i32>} : memref<16x32xf32, #tpu.memory_space<vmem>>, vector<16x32xf32>,
    return
  }
  func.func @transform_0(%arg0: i32) -> (i32, i32) {
    %c0_i32 = arith.constant 0 : i32
    %c0_i32_0 = arith.constant 0 : i32
    return %arg0, %c0_i32 : i32, i32
  }
  func.func @transform_1(%arg0: i32) -> (i32, i32) {
    %c0_i32 = arith.constant 0 : i32
    %c0_i32_0 = arith.constant 0 : i32
    %c0_i32_1 = arith.constant 0 : i32
    return %c0_i32, %c0_i32_0 : i32, i32
  }
  func.func @transform_2(%arg0: i32) -> (i32, i32) {
    %c0_i32 = arith.constant 0 : i32
    %c0_i32_0 = arith.constant 0 : i32
    %c0_i32_1 = arith.constant 0 : i32
    return %c0_i32, %c0_i32_0 : i32, i32
  }
  func.func @transform_3(%arg0: i32) -> (i32, i32) {
    %c0_i32 = arith.constant 0 : i32
    %c0_i32_0 = arith.constant 0 : i32
    return %arg0, %c0_i32 : i32, i32
  }
}

</mosaic_0001>

<llo_original>
// kernel: tpu_custom_call.1
$region0: #{tpu_custom_call.1}
  #allocation0 [shape = 'u32[]', space=smem, size = 0x4, offset = 0x4, fixed_abs, tag = 'smem constant byte address 0x4 - core index']
  #allocation1 [shape = 'u32[144,128]{1,0:T(1,128)}', space=vmem, size = 0x12000, scoped, tag = 'internal scratch']
  %s0 = inlined_call_operand.vmem [shape: f32[16,32], index: 0, kind: input, shape index: {}]
  %s1 = inlined_call_operand.vmem [shape: bf16[32,128], index: 1, kind: input, shape index: {}]
  %s2 = inlined_call_operand.vmem [shape: bf16[128,32], index: 2, kind: input, shape index: {}]
  %s3 = inlined_call_operand.hbm [shape: f32[16,32], index: 3, kind: output, shape index: {}]
  %s4 = sld [smem:[#allocation0]]
  $region22: #{tpu_custom_call.1} parent=0
    _
  %s6 = ssub.s32 1, %s4
  %s7 = scalar_select 0, %s6, %s4
  $region1: #{tpu_custom_call.1} parent=0
    #allocation2 [shape = 'u8[8192]{0}', space=vmem, size = 0x2000, scoped, tag = 'output window, operand 0, single buffered']
    #allocation3 [shape = 's32[1]{0}', space=sflag, size = 0x4, scoped, tag = 'scoped memory for tpu_custom_call.1']
    %8 = vsyncpa [#allocation3], 0
    // Predicated region
    $region2: #{tpu_custom_call.1} parent=1 // pred_check
      _
    $region3: #{tpu_custom_call.1} parent=1 // pred_check_branch
      %10 = sbr.rel (0) target = $region5
    $region4: #{tpu_custom_call.1} parent=1 // pred_region
      _
    $region5: #{tpu_custom_call.1} parent=1 // pred_fallthru
      _
    // Predicated region
    $region6: #{tpu_custom_call.1} parent=1 // pred_check
      _
    $region7: #{tpu_custom_call.1} parent=1 // pred_check_branch
      %12 = sbr.rel (0) target = $region9
    $region8: #{tpu_custom_call.1} parent=1 // pred_region
      _
    $region9: #{tpu_custom_call.1} parent=1 // pred_fallthru
      _
    // Predicated region
    $region10: #{tpu_custom_call.1} parent=1 // pred_check
      _
    $region11: #{tpu_custom_call.1} parent=1 // pred_check_branch
      %14 = sbr.rel (0) target = $region13
    $region12: #{tpu_custom_call.1} parent=1 // pred_region
      _
    $region13: #{tpu_custom_call.1} parent=1 // pred_fallthru
      _
    %v16 = vld [vmem:[%s0] sm:$0xff]
    %v17 = vld [vmem:[%s0 + $0x8] sm:$0xff]
    %v18 = vpack.c.bf16 %v17, %v16
    %v19 = vld [vmem:[%s1] sm:$0xf]
    %v20 = vld [vmem:[%s1 + $0x4] sm:$0xf]
    %v21 = vld [vmem:[%s1 + $0x8] sm:$0xf]
    %v22 = vld [vmem:[%s1 + $0xc] sm:$0xf]
    %v27 = vunpack.c.l.b16 %v19
    %v28 = vunpack.c.l.b16 %v20
    %v29 = vunpack.c.l.b16 %v21
    %v30 = vunpack.c.l.b16 %v22
    %v31 = vpack.c.b16 %v28, %v27
    %v32 = vpack.c.b16 %v30, %v29
    %vm35 = vcmask 261120
    %v37 = vsel %vm35, %v18, 0
    %39 = vmatprep.subr.bf16.mxu0 0
    %40 = vmatpush1.bf16.msra.mxu0 %v31
    %41 = vmatprep.subr.bf16.mxu0 0
    %42 = vmatpush1.bf16.msra.mxu0 %v32
    %43 = vmatprep.subr.bf16.mxu0 0
    %44 = vmatpush1.bf16.msra.mxu0 0
    %45 = vmatprep.subr.bf16.mxu0 0
    %46 = vmatpush1.bf16.msra.mxu0 0
    %47 = vmatprep.subr.bf16.mxu0 0
    %48 = vmatpush1.bf16.msra.mxu0 0
    %49 = vmatprep.subr.bf16.mxu0 0
    %50 = vmatpush1.bf16.msra.mxu0 0
    %51 = vmatprep.subr.bf16.mxu0 0
    %52 = vmatpush1.bf16.msra.mxu0 0
    %53 = vmatprep.subr.bf16.mxu0 0
    %54 = vmatpush1.bf16.msra.mxu0 0
    %55 = vmatprep.subr.bf16.mxu0 0
    %56 = vmatpush1.bf16.msra.mxu0 0
    %57 = vmatprep.subr.bf16.mxu0 0
    %58 = vmatpush1.bf16.msra.mxu0 0
    %59 = vmatprep.subr.bf16.mxu0 0
    %60 = vmatpush1.bf16.msra.mxu0 0
    %61 = vmatprep.subr.bf16.mxu0 0
    %62 = vmatpush1.bf16.msra.mxu0 0
    %63 = vmatprep.subr.bf16.mxu0 0
    %64 = vmatpush1.bf16.msra.mxu0 0
    %65 = vmatprep.subr.bf16.mxu0 0
    %66 = vmatpush1.bf16.msra.mxu0 0
    %67 = vmatprep.subr.bf16.mxu0 0
    %68 = vmatpush1.bf16.msra.mxu0 0
    %69 = vmatprep.subr.bf16.mxu0 0
    %70 = vmatpush1.bf16.msra.mxu0 0
    %71 = vmatprep.mubr.bf16.mxu0 0
    %72 = vmatmul.mubr.bf16.gmra.mrb[0].mxu0 %v37
    %v73 = vpop.f32.mrb[0].mxu0
    %v74 = vadd.f32 0.0, %v73
    %v75 = vpop.f32.mrb[0].mxu0
    %v76 = vpop.f32.mrb[0].mxu0
    %v77 = vadd.f32 0.0, %v76
    %v78 = vpop.f32.mrb[0].mxu0
    %79 = vdwg.mxu0
    %v80 = vmax.f32 %v74, 0.0
    %v81 = vmax.f32 %v77, 0.0
    %v82 = vpack.c.bf16 %v81, %v80
    %v83 = vld [vmem:[%s2] sm:$0xf]
    %v84 = vld [vmem:[%s2 + $0x4] sm:$0xf]
    %v85 = vld [vmem:[%s2 + $0x8] sm:$0xf]
    %v86 = vld [vmem:[%s2 + $0xc] sm:$0xf]
    %v87 = vld [vmem:[%s2 + $0x10] sm:$0xf]
    %v88 = vld [vmem:[%s2 + $0x14] sm:$0xf]
    %v89 = vld [vmem:[%s2 + $0x18] sm:$0xf]
    %v90 = vld [vmem:[%s2 + $0x1c] sm:$0xf]
    %v91 = vld [vmem:[%s2 + $0x20] sm:$0xf]
    %v92 = vld [vmem:[%s2 + $0x24] sm:$0xf]
    %v93 = vld [vmem:[%s2 + $0x28] sm:$0xf]
    %v94 = vld [vmem:[%s2 + $0x2c] sm:$0xf]
    %v95 = vld [vmem:[%s2 + $0x30] sm:$0xf]
    %v96 = vld [vmem:[%s2 + $0x34] sm:$0xf]
    %v97 = vld [vmem:[%s2 + $0x38] sm:$0xf]
    %v98 = vld [vmem:[%s2 + $0x3c] sm:$0xf]
    %v115 = vunpack.c.l.b16 %v83
    %v116 = vunpack.c.l.b16 %v84
    %v117 = vunpack.c.l.b16 %v85
    %v118 = vunpack.c.l.b16 %v86
    %v119 = vunpack.c.l.b16 %v87
    %v120 = vunpack.c.l.b16 %v88
    %v121 = vunpack.c.l.b16 %v89
    %v122 = vunpack.c.l.b16 %v90
    %v123 = vunpack.c.l.b16 %v91
    %v124 = vunpack.c.l.b16 %v92
    %v125 = vunpack.c.l.b16 %v93
    %v126 = vunpack.c.l.b16 %v94
    %v127 = vunpack.c.l.b16 %v95
    %v128 = vunpack.c.l.b16 %v96
    %v129 = vunpack.c.l.b16 %v97
    %v130 = vunpack.c.l.b16 %v98
    %v131 = vpack.c.b16 %v116, %v115
    %v132 = vpack.c.b16 %v118, %v117
    %v133 = vpack.c.b16 %v120, %v119
    %v134 = vpack.c.b16 %v122, %v121
    %v135 = vpack.c.b16 %v124, %v123
    %v136 = vpack.c.b16 %v126, %v125
    %v137 = vpack.c.b16 %v128, %v127
    %v138 = vpack.c.b16 %v130, %v129
    %147 = vmatprep.subr.bf16.mxu0 0
    %148 = vmatpush1.bf16.msra.mxu0 %v131
    %149 = vmatprep.subr.bf16.mxu0 0
    %150 = vmatpush1.bf16.msra.mxu0 %v132
    %151 = vmatprep.subr.bf16.mxu0 0
    %152 = vmatpush1.bf16.msra.mxu0 %v133
    %153 = vmatprep.subr.bf16.mxu0 0
    %154 = vmatpush1.bf16.msra.mxu0 %v134
    %155 = vmatprep.subr.bf16.mxu0 0
    %156 = vmatpush1.bf16.msra.mxu0 %v135
    %157 = vmatprep.subr.bf16.mxu0 0
    %158 = vmatpush1.bf16.msra.mxu0 %v136
    %159 = vmatprep.subr.bf16.mxu0 0
    %160 = vmatpush1.bf16.msra.mxu0 %v137
    %161 = vmatprep.subr.bf16.mxu0 0
    %162 = vmatpush1.bf16.msra.mxu0 %v138
    %163 = vmatprep.subr.bf16.mxu0 0
    %164 = vmatpush1.bf16.msra.mxu0 0
    %165 = vmatprep.subr.bf16.mxu0 0
    %166 = vmatpush1.bf16.msra.mxu0 0
    %167 = vmatprep.subr.bf16.mxu0 0
    %168 = vmatpush1.bf16.msra.mxu0 0
    %169 = vmatprep.subr.bf16.mxu0 0
    %170 = vmatpush1.bf16.msra.mxu0 0
    %171 = vmatprep.subr.bf16.mxu0 0
    %172 = vmatpush1.bf16.msra.mxu0 0
    %173 = vmatprep.subr.bf16.mxu0 0
    %174 = vmatpush1.bf16.msra.mxu0 0
    %175 = vmatprep.subr.bf16.mxu0 0
    %176 = vmatpush1.bf16.msra.mxu0 0
    %177 = vmatprep.subr.bf16.mxu0 0
    %178 = vmatpush1.bf16.msra.mxu0 0
    %179 = vmatprep.mubr.bf16.mxu0 0
    %180 = vmatmul.mubr.bf16.gmra.mrb[0].mxu0 %v82
    %v181 = vpop.f32.mrb[0].mxu0
    %v182 = vadd.f32 0.0, %v181
    %v183 = vpop.f32.mrb[0].mxu0
    %v184 = vpop.f32.mrb[0].mxu0
    %v185 = vadd.f32 0.0, %v184
    %v186 = vpop.f32.mrb[0].mxu0
    %187 = vdwg.mxu0
    %188 = vst.msk [vmem:[#allocation2] sm:$0xff] %vm35, %v182
    %189 = vst.msk [vmem:[#allocation2 + $0x8] sm:$0xff] %vm35, %v185
    // Predicated region
    $region14: #{tpu_custom_call.1} parent=1 // pred_check
      _
    $region15: #{tpu_custom_call.1} parent=1 // pred_check_branch
      %191 = sbr.rel (0) target = $region17
    $region16: #{tpu_custom_call.1} parent=1 // pred_region
      %s193 = ssub.s32 256, 256
      %194 = vsyncadd [#allocation3], %s193
      %s195 = sshll.u32 [#allocation2], 4
      %s196 = int_to_ptr.vmem [resolvable:$true] %s195
      %201 = dma.vmem_to_hbm [thread:$0]  %s196, 256, %s3, [#allocation3], 128, 128, 8
    $region17: #{tpu_custom_call.1} parent=1 // pred_fallthru
      _
    // Predicated region
    $region18: #{tpu_custom_call.1} parent=1 // pred_check
      _
    $region19: #{tpu_custom_call.1} parent=1 // pred_check_branch
      %203 = sbr.rel (0) target = $region21
    $region20: #{tpu_custom_call.1} parent=1 // pred_region
      %204 = dma.done [#allocation3], 256
    $region21: #{tpu_custom_call.1} parent=1 // pred_fallthru
      _
    %205 = vsyncpa [#allocation3], 1

</llo_original>
